<compile_context>
chip_gen: v5e
topology: v5e:2x2
jax: 0.10.0
libtpu: 0.0.40
codegen_flags: <defaults>
</compile_context>

<pallas_src>
import math

import jax
import jax.numpy as jnp
from jax.experimental import pallas as pl
from jax.experimental.pallas import tpu as pltpu


def mhsa_kernel(x_ref, gamma_ref, beta_ref, wq_ref, wk_ref, wv_ref,
                bq_ref, bk_ref, bv_ref, wout_ref, bout_ref,
                o_ref, y_scr):
    """One (batch, head) pair per grid step.

    x_ref      : (S, E)  f32   input block for batch b (constant across h)
    gamma/beta : (1, E)  f32   LayerNorm affine
    wq/wk/wv   : (E, Dh) bf16  this head's projection weights (Q pre-scaled)
    bq/bk/bv   : (1, Dh) f32   this head's projection biases (Q pre-scaled)
    wout_ref   : (Dh, E) bf16  this head's rows of out_proj^T
    bout_ref   : (1, E)  f32   out_proj bias
    o_ref      : (S, E)  f32   output block, accumulated across the head axis
    y_scr      : (S, E)  bf16  VMEM scratch: LayerNorm(x), computed once per b
    """
    h = pl.program_id(1)

    @pl.when(h == 0)
    def _init():
        x = x_ref[...]                                        # (S, E) f32
        mean = jnp.mean(x, axis=-1, keepdims=True)
        xc = x - mean
        var = jnp.mean(xc * xc, axis=-1, keepdims=True)
        inv = jax.lax.rsqrt(var + 1e-5)
        y = xc * inv * gamma_ref[0][None, :] + beta_ref[0][None, :]
        y_scr[...] = y.astype(y_scr.dtype)                    # single bf16 cast
        # Initialize the output accumulator with the out_proj bias.
        o_ref[...] = jnp.broadcast_to(bout_ref[...], o_ref.shape).astype(o_ref.dtype)

    y = y_scr[...]                                            # (S, E) bf16

    # Per-head projections: whole-block operands, no in-kernel lane slicing.
    q = jnp.dot(y, wq_ref[...], preferred_element_type=jnp.float32) + bq_ref[...]
    k = jnp.dot(y, wk_ref[...], preferred_element_type=jnp.float32) + bk_ref[...]
    v = jnp.dot(y, wv_ref[...], preferred_element_type=jnp.float32) + bv_ref[...]

    # q @ k^T via contracting-dim spec (no materialized transpose); the
    # 1/sqrt(Dh) scale is already folded into the Q weights/bias.
    s = jax.lax.dot_general(q.astype(jnp.bfloat16), k.astype(jnp.bfloat16),
                            (((1,), (1,)), ((), ())),
                            preferred_element_type=jnp.float32)   # (S, S) f32
    m = jnp.max(s, axis=-1, keepdims=True)
    e = jnp.exp(s - m)
    p = e * pl.reciprocal(jnp.sum(e, axis=-1, keepdims=True), approx=True)

    attn = jnp.dot(p.astype(jnp.bfloat16), v.astype(jnp.bfloat16),
                   preferred_element_type=jnp.float32)            # (S, Dh) f32

    # Fused output projection: this head's (Dh, E) slice of W_out^T,
    # accumulated in f32 directly into the output block.
    o_ref[...] += jnp.dot(attn.astype(jnp.bfloat16), wout_ref[...],
                          preferred_element_type=jnp.float32).astype(o_ref.dtype)


def _vmem_capacity_bytes():
    try:
        return int(pltpu.get_tpu_info().vmem_capacity_bytes)
    except Exception:
        return 64 << 20          # conservative default (v7x per-TensorCore)


def mhsa_block(x, gamma, beta, w_in, b_in, w_out, b_out, *, num_heads):
    """x: (B, S, E) float32.  PyTorch parameter shapes:
       w_in (3E, E), b_in (3E,), w_out (E, E), b_out (E,), gamma/beta (E,)."""
    B, S, E = x.shape
    H = num_heads
    Dh = E // H
    scale = 1.0 / math.sqrt(Dh)

    # ---- host-side weight surgery (free): per-head, pre-transposed blocks ----
    w_q, w_k, w_v = w_in[:E], w_in[E:2 * E], w_in[2 * E:]
    b_q, b_k, b_v = b_in[:E], b_in[E:2 * E], b_in[2 * E:]

    def to_heads(w):                                   # (E, E) -> (H, E, Dh)
        return w.reshape(H, Dh, E).transpose(0, 2, 1)

    wq = to_heads(w_q * scale).astype(jnp.bfloat16)    # query scale folded in
    wk = to_heads(w_k).astype(jnp.bfloat16)
    wv = to_heads(w_v).astype(jnp.bfloat16)
    bq = (b_q * scale).reshape(H, 1, Dh).astype(jnp.float32)
    bk = b_k.reshape(H, 1, Dh).astype(jnp.float32)
    bv = b_v.reshape(H, 1, Dh).astype(jnp.float32)
    wo = w_out.T.reshape(H, Dh, E).astype(jnp.bfloat16)
    bo = b_out.reshape(1, E).astype(jnp.float32)
    g2 = gamma.reshape(1, E).astype(jnp.float32)
    be2 = beta.reshape(1, E).astype(jnp.float32)

    # ---- advisory cost estimate ----
    flops = int(2 * B * S * E * 3 * E            # QKV projections (all heads)
                + 4 * B * S * S * E              # QK^T + PV over all heads
                + 2 * B * S * E * E)             # output projection
    transcendentals = int(B * H * S * S)
    bytes_accessed = int(4 * B * S * E * 2       # x in + out (f32)
                         + 2 * 4 * E * E         # bf16 weights
                         + 4 * (3 * E + 4 * E))  # biases + LN affine

    # ---- generation-aware VMEM budget ----
    per_step = (2 * (S * E * 4)                  # x block, double-buffered
                + 2 * (S * E * 4)                # out block, double-buffered
                + 2 * 4 * E * Dh * 2             # wq/wk/wv/wout bf16, 2 buffers
                + 8 * 8 * 128 * 4                # small bias / affine blocks
                + S * E * 2                      # y scratch (bf16)
                + (S * S + 3 * S * Dh + 2 * S * E) * 4)   # intermediates
    cap = _vmem_capacity_bytes()
    vmem_limit = int(min(max(4 * per_step, 16 << 20), (cap * 3) // 4))

    head_idx = lambda b, h: (h, 0, 0)
    batch_idx = lambda b, h: (b, 0, 0)
    const_idx = lambda b, h: (0, 0)

    return pl.pallas_call(
        mhsa_kernel,
        out_shape=jax.ShapeDtypeStruct((B, S, E), x.dtype),
        grid_spec=pltpu.PrefetchScalarGridSpec(
            num_scalar_prefetch=0,
            grid=(B, H),                               # batch parallel, heads reduce
            in_specs=[
                pl.BlockSpec((None, S, E), batch_idx),     # x
                pl.BlockSpec((1, E), const_idx),           # LN gamma
                pl.BlockSpec((1, E), const_idx),           # LN beta
                pl.BlockSpec((None, E, Dh), head_idx),     # Wq  (head h)
                pl.BlockSpec((None, E, Dh), head_idx),     # Wk  (head h)
                pl.BlockSpec((None, E, Dh), head_idx),     # Wv  (head h)
                pl.BlockSpec((None, 1, Dh), head_idx),     # bq  (head h)
                pl.BlockSpec((None, 1, Dh), head_idx),     # bk  (head h)
                pl.BlockSpec((None, 1, Dh), head_idx),     # bv  (head h)
                pl.BlockSpec((None, Dh, E), head_idx),     # Wout rows (head h)
                pl.BlockSpec((1, E), const_idx),           # bout
            ],
            out_specs=pl.BlockSpec((None, S, E), batch_idx),
            scratch_shapes=[pltpu.VMEM((S, E), jnp.bfloat16)],
        ),
        compiler_params=pltpu.CompilerParams(
            dimension_semantics=("parallel", "arbitrary"),
            vmem_limit_bytes=vmem_limit),
        cost_estimate=pl.CostEstimate(
            flops=flops, transcendentals=transcendentals,
            bytes_accessed=bytes_accessed),
    )(x, g2, be2, wq, wk, wv, bq, bk, bv, wo, bo)


def reference(x, gamma, beta, w_in, b_in, w_out, b_out, *, num_heads):
    """Pure-JAX f32 reference mirroring PyTorch semantics (eval mode)."""
    B, S, E = x.shape
    Dh = E // num_heads
    mean = jnp.mean(x, axis=-1, keepdims=True)
    var = jnp.mean((x - mean) ** 2, axis=-1, keepdims=True)
    y = (x - mean) / jnp.sqrt(var + 1e-5) * gamma + beta
    qkv = jnp.einsum("bse,fe->bsf", y, w_in) + b_in
    q, k, v = jnp.split(qkv, 3, axis=-1)
    q = q.reshape(B, S, num_heads, Dh).transpose(0, 2, 1, 3)
    k = k.reshape(B, S, num_heads, Dh).transpose(0, 2, 1, 3)
    v = v.reshape(B, S, num_heads, Dh).transpose(0, 2, 1, 3)
    s = jnp.einsum("bhqd,bhkd->bhqk", q, k) / math.sqrt(Dh)
    p = jax.nn.softmax(s, axis=-1)
    o = jnp.einsum("bhqk,bhkd->bhqd", p, v)
    o = o.transpose(0, 2, 1, 3).reshape(B, S, E)
    return jnp.einsum("bse,fe->bsf", o, w_out) + b_out


if __name__ == "__main__":
    # Small demo shape; E is a multiple of 128 so all blocks are lane-dense
    # (matches real ViT embed dims).  head_dim = 32.
    B, S, E, H = 2, 16, 128, 4

    key = jax.random.PRNGKey(0)
    kx, k1, k2, k3, k4, k5, k6 = jax.random.split(key, 7)

    x = jax.random.normal(kx, (B, S, E), dtype=jnp.float32)

    gamma = 1.0 + 0.05 * jax.random.normal(k1, (E,), dtype=jnp.float32)
    beta = 0.05 * jax.random.normal(k2, (E,), dtype=jnp.float32)
    w_in = 0.05 * jax.random.normal(k3, (3 * E, E), dtype=jnp.float32)
    b_in = 0.05 * jax.random.normal(k4, (3 * E,), dtype=jnp.float32)
    w_out = 0.05 * jax.random.normal(k5, (E, E), dtype=jnp.float32)
    b_out = 0.05 * jax.random.normal(k6, (E,), dtype=jnp.float32)

    out = mhsa_block(x, gamma, beta, w_in, b_in, w_out, b_out, num_heads=H)
    out = jax.block_until_ready(out)

    ref = reference(x, gamma, beta, w_in, b_in, w_out, b_out, num_heads=H)
    assert out.shape == (B, S, E)
    err = jnp.max(jnp.abs(out - ref))
    # bf16 matmul operands (f32 accumulation) + approx reciprocal vs f32 reference.
    assert jnp.allclose(out, ref, atol=2e-2, rtol=2e-2), f"max err {err}"

    print("KERNEL_OK")
</pallas_src>

<mosaic_0001>
module attributes {stable_mosaic.version = 11 : i64} {
  func.func @mhsa_kernel(%arg0: i32, %arg1: i32, %arg2: memref<1x16x128xf32, #tpu.memory_space<vmem>>, %arg3: memref<1x128xf32, #tpu.memory_space<vmem>>, %arg4: memref<1x128xf32, #tpu.memory_space<vmem>>, %arg5: memref<1x128x32xbf16, #tpu.memory_space<vmem>>, %arg6: memref<1x128x32xbf16, #tpu.memory_space<vmem>>, %arg7: memref<1x128x32xbf16, #tpu.memory_space<vmem>>, %arg8: memref<1x1x32xf32, #tpu.memory_space<vmem>>, %arg9: memref<1x1x32xf32, #tpu.memory_space<vmem>>, %arg10: memref<1x1x32xf32, #tpu.memory_space<vmem>>, %arg11: memref<1x32x128xbf16, #tpu.memory_space<vmem>>, %arg12: memref<1x128xf32, #tpu.memory_space<vmem>>, %arg13: memref<1x16x128xf32, #tpu.memory_space<vmem>>, %arg14: memref<16x128xbf16, #tpu.memory_space<vmem>>) attributes {dimension_semantics = [#tpu.dimension_semantics<parallel>, #tpu.dimension_semantics<arbitrary>], iteration_bounds = array<i64: 2, 4>, scalar_prefetch = 0 : i64, scratch_operands = 1 : i64, tpu.core_type = #tpu.core_type<tc>, window_params = [{transform_indices = @transform_0, window_bounds = array<i64: 1, 16, 128>}, {pipeline_mode = #tpu.pipeline_mode<synchronous>, transform_indices = @transform_1, window_bounds = array<i64: 1, 128>}, {pipeline_mode = #tpu.pipeline_mode<synchronous>, transform_indices = @transform_2, window_bounds = array<i64: 1, 128>}, {transform_indices = @transform_3, window_bounds = array<i64: 1, 128, 32>}, {transform_indices = @transform_4, window_bounds = array<i64: 1, 128, 32>}, {transform_indices = @transform_5, window_bounds = array<i64: 1, 128, 32>}, {transform_indices = @transform_6, window_bounds = array<i64: 1, 1, 32>}, {transform_indices = @transform_7, window_bounds = array<i64: 1, 1, 32>}, {transform_indices = @transform_8, window_bounds = array<i64: 1, 1, 32>}, {transform_indices = @transform_9, window_bounds = array<i64: 1, 32, 128>}, {pipeline_mode = #tpu.pipeline_mode<synchronous>, transform_indices = @transform_10, window_bounds = array<i64: 1, 128>}, {transform_indices = @transform_11, window_bounds = array<i64: 1, 16, 128>}]} {
    %c0_i32 = arith.constant 0 : i32
    %0 = arith.cmpi eq, %arg1, %c0_i32 : i32
    %1 = arith.extui %0 : i1 to i32
    %c0_i32_0 = arith.constant 0 : i32
    %2 = arith.cmpi ne, %1, %c0_i32_0 : i32
    scf.if %2 {
      %c0_36 = arith.constant 0 : index
      %c0_37 = arith.constant 0 : index
      %c0_38 = arith.constant 0 : index
      %51 = vector.load %arg2[%c0_36, %c0_37, %c0_38] : memref<1x16x128xf32, #tpu.memory_space<vmem>>, vector<1x16x128xf32>
      %52 = vector.shape_cast %51 : vector<1x16x128xf32> to vector<16x128xf32>
      %cst_39 = arith.constant dense<0.000000e+00> : vector<16xf32>
      %53 = vector.multi_reduction <add>, %52, %cst_39 [1] : vector<16x128xf32> to vector<16xf32>
      %54 = vector.shape_cast %53 : vector<16xf32> to vector<16x1xf32>
      %cst_40 = arith.constant 1.280000e+02 : f32
      %55 = vector.broadcast %cst_40 : f32 to vector<16x1xf32>
      %56 = arith.divf %54, %55 : vector<16x1xf32>
      %57 = vector.broadcast %56 : vector<16x1xf32> to vector<16x128xf32>
      %58 = arith.subf %52, %57 : vector<16x128xf32>
      %59 = arith.mulf %58, %58 : vector<16x128xf32>
      %cst_41 = arith.constant dense<0.000000e+00> : vector<16xf32>
      %60 = vector.multi_reduction <add>, %59, %cst_41 [1] : vector<16x128xf32> to vector<16xf32>
      %61 = vector.shape_cast %60 : vector<16xf32> to vector<16x1xf32>
      %cst_42 = arith.constant 1.280000e+02 : f32
      %62 = vector.broadcast %cst_42 : f32 to vector<16x1xf32>
      %63 = arith.divf %61, %62 : vector<16x1xf32>
      %cst_43 = arith.constant 9.99999974E-6 : f32
      %64 = vector.broadcast %cst_43 : f32 to vector<16x1xf32>
      %65 = arith.addf %63, %64 : vector<16x1xf32>
      %66 = math.rsqrt %65 : vector<16x1xf32>
      %67 = vector.broadcast %66 : vector<16x1xf32> to vector<16x128xf32>
      %68 = arith.mulf %58, %67 : vector<16x128xf32>
      %c0_44 = arith.constant 0 : index
      %c0_45 = arith.constant 0 : index
      %69 = vector.load %arg3[%c0_44, %c0_45] : memref<1x128xf32, #tpu.memory_space<vmem>>, vector<1x128xf32>
      %70 = vector.shape_cast %69 : vector<1x128xf32> to vector<128xf32>
      %71 = vector.shape_cast %70 : vector<128xf32> to vector<1x128xf32>
      %72 = vector.broadcast %71 : vector<1x128xf32> to vector<16x128xf32>
      %73 = arith.mulf %68, %72 : vector<16x128xf32>
      %c0_46 = arith.constant 0 : index
      %c0_47 = arith.constant 0 : index
      %74 = vector.load %arg4[%c0_46, %c0_47] : memref<1x128xf32, #tpu.memory_space<vmem>>, vector<1x128xf32>
      %75 = vector.shape_cast %74 : vector<1x128xf32> to vector<128xf32>
      %76 = vector.shape_cast %75 : vector<128xf32> to vector<1x128xf32>
      %77 = vector.broadcast %76 : vector<1x128xf32> to vector<16x128xf32>
      %78 = arith.addf %73, %77 : vector<16x128xf32>
      %79 = arith.truncf %78 : vector<16x128xf32> to vector<16x128xbf16>
      %c0_48 = arith.constant 0 : index
      %c0_49 = arith.constant 0 : index
      %80 = vector.load %arg14[%c0_48, %c0_49] : memref<16x128xbf16, #tpu.memory_space<vmem>>, vector<16x128xbf16>
      tpu.vector_store %arg14[%c0_48, %c0_49], %79 {strides = array<i32>} : memref<16x128xbf16, #tpu.memory_space<vmem>>, vector<16x128xbf16>,
      %c0_50 = arith.constant 0 : index
      %c0_51 = arith.constant 0 : index
      %81 = vector.load %arg12[%c0_50, %c0_51] : memref<1x128xf32, #tpu.memory_space<vmem>>, vector<1x128xf32>
      %82 = vector.shape_cast %81 : vector<1x128xf32> to vector<1x128xf32>
      %83 = vector.broadcast %82 : vector<1x128xf32> to vector<16x128xf32>
      %c0_52 = arith.constant 0 : index
      %c0_53 = arith.constant 0 : index
      %c0_54 = arith.constant 0 : index
      %84 = vector.load %arg13[%c0_52, %c0_53, %c0_54] : memref<1x16x128xf32, #tpu.memory_space<vmem>>, vector<1x16x128xf32>
      %85 = vector.shape_cast %84 : vector<1x16x128xf32> to vector<16x128xf32>
      %86 = vector.shape_cast %83 : vector<16x128xf32> to vector<1x16x128xf32>
      tpu.vector_store %arg13[%c0_52, %c0_53, %c0_54], %86 {strides = array<i32>} : memref<1x16x128xf32, #tpu.memory_space<vmem>>, vector<1x16x128xf32>,
    } else {
    }
    %c0 = arith.constant 0 : index
    %c0_1 = arith.constant 0 : index
    %3 = vector.load %arg14[%c0, %c0_1] : memref<16x128xbf16, #tpu.memory_space<vmem>>, vector<16x128xbf16>
    %c0_2 = arith.constant 0 : index
    %c0_3 = arith.constant 0 : index
    %c0_4 = arith.constant 0 : index
    %4 = vector.load %arg5[%c0_2, %c0_3, %c0_4] : memref<1x128x32xbf16, #tpu.memory_space<vmem>>, vector<1x128x32xbf16>
    %5 = vector.shape_cast %4 : vector<1x128x32xbf16> to vector<128x32xbf16>
    %cst = arith.constant dense<0.000000e+00> : vector<16x32xf32>
    %6 = tpu.matmul %3, %5, %cst {dimension_numbers = #tpu.dot_dimension_numbers<[1], [0], [0], [1], [0, 0, 1, 1], [], []>} : vector<16x128xbf16>, vector<128x32xbf16>, vector<16x32xf32> -> vector<16x32xf32>
    %c0_5 = arith.constant 0 : index
    %c0_6 = arith.constant 0 : index
    %c0_7 = arith.constant 0 : index
    %7 = vector.load %arg8[%c0_5, %c0_6, %c0_7] : memref<1x1x32xf32, #tpu.memory_space<vmem>>, vector<1x1x32xf32>
    %8 = vector.shape_cast %7 : vector<1x1x32xf32> to vector<1x32xf32>
    %9 = vector.broadcast %8 : vector<1x32xf32> to vector<16x32xf32>
    %10 = arith.addf %6, %9 : vector<16x32xf32>
    %c0_8 = arith.constant 0 : index
    %c0_9 = arith.constant 0 : index
    %c0_10 = arith.constant 0 : index
    %11 = vector.load %arg6[%c0_8, %c0_9, %c0_10] : memref<1x128x32xbf16, #tpu.memory_space<vmem>>, vector<1x128x32xbf16>
    %12 = vector.shape_cast %11 : vector<1x128x32xbf16> to vector<128x32xbf16>
    %cst_11 = arith.constant dense<0.000000e+00> : vector<16x32xf32>
    %13 = tpu.matmul %3, %12, %cst_11 {dimension_numbers = #tpu.dot_dimension_numbers<[1], [0], [0], [1], [0, 0, 1, 1], [], []>} : vector<16x128xbf16>, vector<128x32xbf16>, vector<16x32xf32> -> vector<16x32xf32>
    %c0_12 = arith.constant 0 : index
    %c0_13 = arith.constant 0 : index
    %c0_14 = arith.constant 0 : index
    %14 = vector.load %arg9[%c0_12, %c0_13, %c0_14] : memref<1x1x32xf32, #tpu.memory_space<vmem>>, vector<1x1x32xf32>
    %15 = vector.shape_cast %14 : vector<1x1x32xf32> to vector<1x32xf32>
    %16 = vector.broadcast %15 : vector<1x32xf32> to vector<16x32xf32>
    %17 = arith.addf %13, %16 : vector<16x32xf32>
    %c0_15 = arith.constant 0 : index
    %c0_16 = arith.constant 0 : index
    %c0_17 = arith.constant 0 : index
    %18 = vector.load %arg7[%c0_15, %c0_16, %c0_17] : memref<1x128x32xbf16, #tpu.memory_space<vmem>>, vector<1x128x32xbf16>
    %19 = vector.shape_cast %18 : vector<1x128x32xbf16> to vector<128x32xbf16>
    %cst_18 = arith.constant dense<0.000000e+00> : vector<16x32xf32>
    %20 = tpu.matmul %3, %19, %cst_18 {dimension_numbers = #tpu.dot_dimension_numbers<[1], [0], [0], [1], [0, 0, 1, 1], [], []>} : vector<16x128xbf16>, vector<128x32xbf16>, vector<16x32xf32> -> vector<16x32xf32>
    %c0_19 = arith.constant 0 : index
    %c0_20 = arith.constant 0 : index
    %c0_21 = arith.constant 0 : index
    %21 = vector.load %arg10[%c0_19, %c0_20, %c0_21] : memref<1x1x32xf32, #tpu.memory_space<vmem>>, vector<1x1x32xf32>
    %22 = vector.shape_cast %21 : vector<1x1x32xf32> to vector<1x32xf32>
    %23 = vector.broadcast %22 : vector<1x32xf32> to vector<16x32xf32>
    %24 = arith.addf %20, %23 : vector<16x32xf32>
    %25 = arith.truncf %10 : vector<16x32xf32> to vector<16x32xbf16>
    %26 = arith.truncf %17 : vector<16x32xf32> to vector<16x32xbf16>
    %cst_22 = arith.constant dense<0.000000e+00> : vector<16x16xf32>
    %27 = tpu.matmul %25, %26, %cst_22 {dimension_numbers = #tpu.dot_dimension_numbers<[1], [1], [0], [0], [0, 0, 1, 0], [], []>} : vector<16x32xbf16>, vector<16x32xbf16>, vector<16x16xf32> -> vector<16x16xf32>
    %cst_23 = arith.constant dense<0xFF800000> : vector<16xf32>
    %28 = vector.multi_reduction <maximumf>, %27, %cst_23 [1] : vector<16x16xf32> to vector<16xf32>
    %29 = vector.shape_cast %28 : vector<16xf32> to vector<16x1xf32>
    %30 = vector.broadcast %29 : vector<16x1xf32> to vector<16x16xf32>
    %31 = arith.subf %27, %30 : vector<16x16xf32>
    %32 = math.exp %31 : vector<16x16xf32>
    %cst_24 = arith.constant dense<0.000000e+00> : vector<16xf32>
    %33 = vector.multi_reduction <add>, %32, %cst_24 [1] : vector<16x16xf32> to vector<16xf32>
    %34 = vector.shape_cast %33 : vector<16xf32> to vector<16x1xf32>
    %35 = tpu.reciprocal %34 {approx = true} : vector<16x1xf32> -> vector<16x1xf32>
    %36 = vector.broadcast %35 : vector<16x1xf32> to vector<16x16xf32>
    %37 = arith.mulf %32, %36 : vector<16x16xf32>
    %38 = arith.truncf %37 : vector<16x16xf32> to vector<16x16xbf16>
    %39 = arith.truncf %24 : vector<16x32xf32> to vector<16x32xbf16>
    %cst_25 = arith.constant dense<0.000000e+00> : vector<16x32xf32>
    %40 = tpu.matmul %38, %39, %cst_25 {dimension_numbers = #tpu.dot_dimension_numbers<[1], [0], [0], [1], [0, 0, 1, 1], [], []>} : vector<16x16xbf16>, vector<16x32xbf16>, vector<16x32xf32> -> vector<16x32xf32>
    %c0_26 = arith.constant 0 : index
    %c0_27 = arith.constant 0 : index
    %c0_28 = arith.constant 0 : index
    %41 = vector.load %arg13[%c0_26, %c0_27, %c0_28] : memref<1x16x128xf32, #tpu.memory_space<vmem>>, vector<1x16x128xf32>
    %42 = vector.shape_cast %41 : vector<1x16x128xf32> to vector<16x128xf32>
    %43 = arith.truncf %40 : vector<16x32xf32> to vector<16x32xbf16>
    %c0_29 = arith.constant 0 : index
    %c0_30 = arith.constant 0 : index
    %c0_31 = arith.constant 0 : index
    %44 = vector.load %arg11[%c0_29, %c0_30, %c0_31] : memref<1x32x128xbf16, #tpu.memory_space<vmem>>, vector<1x32x128xbf16>
    %45 = vector.shape_cast %44 : vector<1x32x128xbf16> to vector<32x128xbf16>
    %cst_32 = arith.constant dense<0.000000e+00> : vector<16x128xf32>
    %46 = tpu.matmul %43, %45, %cst_32 {dimension_numbers = #tpu.dot_dimension_numbers<[1], [0], [0], [1], [0, 0, 1, 1], [], []>} : vector<16x32xbf16>, vector<32x128xbf16>, vector<16x128xf32> -> vector<16x128xf32>
    %47 = arith.addf %42, %46 : vector<16x128xf32>
    %c0_33 = arith.constant 0 : index
    %c0_34 = arith.constant 0 : index
    %c0_35 = arith.constant 0 : index
    %48 = vector.load %arg13[%c0_33, %c0_34, %c0_35] : memref<1x16x128xf32, #tpu.memory_space<vmem>>, vector<1x16x128xf32>
    %49 = vector.shape_cast %48 : vector<1x16x128xf32> to vector<16x128xf32>
    %50 = vector.shape_cast %47 : vector<16x128xf32> to vector<1x16x128xf32>
    tpu.vector_store %arg13[%c0_33, %c0_34, %c0_35], %50 {strides = array<i32>} : memref<1x16x128xf32, #tpu.memory_space<vmem>>, vector<1x16x128xf32>,
    return
  }
  func.func @transform_0(%arg0: i32, %arg1: i32) -> (i32, i32, i32) {
    %c0_i32 = arith.constant 0 : i32
    %c0_i32_0 = arith.constant 0 : i32
    %c0_i32_1 = arith.constant 0 : i32
    return %arg0, %c0_i32, %c0_i32_0 : i32, i32, i32
  }
  func.func @transform_1(%arg0: i32, %arg1: i32) -> (i32, i32) {
    %c0_i32 = arith.constant 0 : i32
    %c0_i32_0 = arith.constant 0 : i32
    %c0_i32_1 = arith.constant 0 : i32
    return %c0_i32, %c0_i32_0 : i32, i32
  }
  func.func @transform_2(%arg0: i32, %arg1: i32) -> (i32, i32) {
    %c0_i32 = arith.constant 0 : i32
    %c0_i32_0 = arith.constant 0 : i32
    %c0_i32_1 = arith.constant 0 : i32
    return %c0_i32, %c0_i32_0 : i32, i32
  }
  func.func @transform_3(%arg0: i32, %arg1: i32) -> (i32, i32, i32) {
    %c0_i32 = arith.constant 0 : i32
    %c0_i32_0 = arith.constant 0 : i32
    %c0_i32_1 = arith.constant 0 : i32
    return %arg1, %c0_i32, %c0_i32_0 : i32, i32, i32
  }
  func.func @transform_4(%arg0: i32, %arg1: i32) -> (i32, i32, i32) {
    %c0_i32 = arith.constant 0 : i32
    %c0_i32_0 = arith.constant 0 : i32
    %c0_i32_1 = arith.constant 0 : i32
    return %arg1, %c0_i32, %c0_i32_0 : i32, i32, i32
  }
  func.func @transform_5(%arg0: i32, %arg1: i32) -> (i32, i32, i32) {
    %c0_i32 = arith.constant 0 : i32
    %c0_i32_0 = arith.constant 0 : i32
    %c0_i32_1 = arith.constant 0 : i32
    return %arg1, %c0_i32, %c0_i32_0 : i32, i32, i32
  }
  func.func @transform_6(%arg0: i32, %arg1: i32) -> (i32, i32, i32) {
    %c0_i32 = arith.constant 0 : i32
    %c0_i32_0 = arith.constant 0 : i32
    %c0_i32_1 = arith.constant 0 : i32
    return %arg1, %c0_i32, %c0_i32_0 : i32, i32, i32
  }
  func.func @transform_7(%arg0: i32, %arg1: i32) -> (i32, i32, i32) {
    %c0_i32 = arith.constant 0 : i32
    %c0_i32_0 = arith.constant 0 : i32
    %c0_i32_1 = arith.constant 0 : i32
    return %arg1, %c0_i32, %c0_i32_0 : i32, i32, i32
  }
  func.func @transform_8(%arg0: i32, %arg1: i32) -> (i32, i32, i32) {
    %c0_i32 = arith.constant 0 : i32
    %c0_i32_0 = arith.constant 0 : i32
    %c0_i32_1 = arith.constant 0 : i32
    return %arg1, %c0_i32, %c0_i32_0 : i32, i32, i32
  }
  func.func @transform_9(%arg0: i32, %arg1: i32) -> (i32, i32, i32) {
    %c0_i32 = arith.constant 0 : i32
    %c0_i32_0 = arith.constant 0 : i32
    %c0_i32_1 = arith.constant 0 : i32
    return %arg1, %c0_i32, %c0_i32_0 : i32, i32, i32
  }
  func.func @transform_10(%arg0: i32, %arg1: i32) -> (i32, i32) {
    %c0_i32 = arith.constant 0 : i32
    %c0_i32_0 = arith.constant 0 : i32
    %c0_i32_1 = arith.constant 0 : i32
    return %c0_i32, %c0_i32_0 : i32, i32
  }
  func.func @transform_11(%arg0: i32, %arg1: i32) -> (i32, i32, i32) {
    %c0_i32 = arith.constant 0 : i32
    %c0_i32_0 = arith.constant 0 : i32
    %c0_i32_1 = arith.constant 0 : i32
    return %arg0, %c0_i32, %c0_i32_0 : i32, i32, i32
  }
}

</mosaic_0001>

<llo_original>
// kernel: tpu_custom_call.1
$region0: #{tpu_custom_call.1}
  #allocation0 [shape = 'u32[]', space=smem, size = 0x4, offset = 0x4, fixed_abs, tag = 'smem constant byte address 0x4 - core index']
  #allocation1 [shape = 'u32[72,128]{1,0:T(1,128)}', space=vmem, size = 0x9000, scoped, tag = 'internal scratch']
  #allocation2 [shape = 'bf16[16,128]{1,0:T(8,128)(2,1)}', space=vmem, size = 0x1000, scoped, tag = 'scratch operand']
  %s0 = inlined_call_operand.vmem [shape: f32[2,16,128], index: 0, kind: input, shape index: {}]
  %s1 = inlined_call_operand.vmem [shape: f32[1,128], index: 1, kind: input, shape index: {}]
  %s2 = inlined_call_operand.vmem [shape: f32[1,128], index: 2, kind: input, shape index: {}]
  %s3 = inlined_call_operand.vmem [shape: bf16[4,128,32], index: 3, kind: input, shape index: {}]
  %s4 = inlined_call_operand.vmem [shape: bf16[4,128,32], index: 4, kind: input, shape index: {}]
  %s5 = inlined_call_operand.vmem [shape: bf16[4,128,32], index: 5, kind: input, shape index: {}]
  %s6 = inlined_call_operand.vmem [shape: f32[4,1,32], index: 6, kind: input, shape index: {}]
  %s7 = inlined_call_operand.vmem [shape: f32[4,1,32], index: 7, kind: input, shape index: {}]
  %s8 = inlined_call_operand.vmem [shape: f32[4,1,32], index: 8, kind: input, shape index: {}]
  %s9 = inlined_call_operand.vmem [shape: bf16[4,32,128], index: 9, kind: input, shape index: {}]
  %s10 = inlined_call_operand.vmem [shape: f32[1,128], index: 10, kind: input, shape index: {}]
  %s11 = inlined_call_operand.hbm [shape: f32[2,16,128], index: 11, kind: output, shape index: {}]
  %s12 = sld [smem:[#allocation0]]
  $region81: #{tpu_custom_call.1} parent=0
    _
  %s14 = ssub.s32 1, %s12
  %s15 = scalar_select 0, %s14, %s12
  $region1: #{tpu_custom_call.1} parent=0
    #allocation3 [shape = 'u8[16384]{0}', space=vmem, size = 0x4000, scoped, tag = 'output window, operand 0']
    #allocation4 [shape = 's32[2]{0}', space=sflag, size = 0x8, scoped, tag = 'scoped memory for tpu_custom_call.1']
    %16 = vsyncpa [#allocation4], 0
    %s17 = scalar_lea.sflag [#allocation4], 1
    %18 = vsyncpa %s17, 0
    loop: start=0, step=1, limit=10
    $region2: #{tpu_custom_call.1} parent=1 // loop_pre_header
      _
    $region3: #{tpu_custom_call.1} parent=1 // loop_header
      %s20 = sphi 0, %s24
      %p21 = scmp.ge.s32.totalorder %s20, 10
      %s27 = sphi 0, %s39
      %s28 = sphi 0, %s35
      %s29 = sphi 0, %s27
      %s30 = sphi 0, %s28
      %s31 = sphi 0, %s29
      %s32 = sphi 0, %s30
      %s42 = sphi 0, %s44
      %s45 = sphi 0, %s42
      %s46 = sphi 0, %s45
      %s62 = sphi 0, %s46
      %s66 = sphi 0, %s66
      %s68 = sphi 0, %s66
      %s69 = sphi 0, %s68
      %s83 = sphi 0, %s69
      %s87 = sphi 0, %s87
      %s89 = sphi 0, %s87
      %s90 = sphi 0, %s89
      %s104 = sphi 0, %s90
      %s110 = sphi 0, %s112
      %s113 = sphi 0, %s110
      %s114 = sphi 0, %s113
      %s130 = sphi 0, %s114
      %s136 = sphi 0, %s138
      %s139 = sphi 0, %s136
      %s140 = sphi 0, %s139
      %s156 = sphi 0, %s140
      %s162 = sphi 0, %s164
      %s165 = sphi 0, %s162
      %s166 = sphi 0, %s165
      %s182 = sphi 0, %s166
      %s188 = sphi 0, %s190
      %s191 = sphi 0, %s188
      %s192 = sphi 0, %s191
      %s208 = sphi 0, %s192
      %s214 = sphi 0, %s216
      %s217 = sphi 0, %s214
      %s218 = sphi 0, %s217
      %s234 = sphi 0, %s218
      %s240 = sphi 0, %s242
      %s243 = sphi 0, %s240
      %s244 = sphi 0, %s243
      %s260 = sphi 0, %s244
      %s266 = sphi 0, %s268
      %s269 = sphi 0, %s266
      %s270 = sphi 0, %s269
      %s286 = sphi 0, %s270
      %s290 = sphi 0, %s290
      %s292 = sphi 0, %s290
      %s293 = sphi 0, %s292
      %s307 = sphi 0, %s293
      %s313 = sphi 0, %s315
      %s316 = sphi 0, %s313
      %s317 = sphi 0, %s316
      %s333 = sphi 0, %s317
    $region4: #{tpu_custom_call.1} parent=1 // loop_header_branch
      %23 = sbr.rel (%p21) target = $region8
    $region5: #{tpu_custom_call.1} parent=1 // loop_body
      %s25 = ssub.s32 %s20, 1
      %s26 = ssub.s32 %s20, 2
      %s33 = sadd.s32 1, %s28
      %p34 = scmp.ge.s32.totalorder %s33, 4
      %s35 = scalar_select %p34, 0, %s33
      %s36 = sadd.s32 1, %s27
      %s37 = scalar_select %p34, %s36, %s27
      %p38 = scmp.ge.s32.totalorder %s37, 2
      %s39 = scalar_select %p38, 0, %s37
      %s40 = ssub.s32 %s27, %s39
      %p41 = scmp.eq.s32.totalorder %s40, 0
      %s43 = sadd.s32 %s42, 1
      %s44 = scalar_select %p41, %s42, %s43
      %p47 = pneg %p41
      %p48 = scmp.eq.s32.totalorder %s20, 7
      %p49 = por %p47, %p48
      %p50 = scmp.ne.s32.totalorder %s42, %s45
      %p51 = scmp.eq.s32.totalorder %s20, 0
      %p52 = por %p50, %p51
      %p53 = scmp.ne.s32.totalorder %s42, %s45
      %p54 = scmp.eq.s32.totalorder %s25, 7
      %p55 = por %p53, %p54
      %p56 = scmp.ne.s32.totalorder %s45, %s46
      %p57 = scmp.eq.s32.totalorder %s25, 0
      %p58 = por %p56, %p57
      %p59 = scmp.ne.s32.totalorder %s45, %s46
      %p60 = scmp.eq.s32.totalorder %s26, 7
      %p61 = por %p59, %p60
      %p63 = scmp.ne.s32.totalorder %s46, %s62
      %p64 = scmp.eq.s32.totalorder %s26, 0
      %p65 = por %p63, %p64
      %s67 = sadd.s32 %s66, 1
      %p70 = scmp.eq.s32.totalorder %s20, 7
      %p71 = scmp.ne.s32.totalorder %s66, %s68
      %p72 = scmp.eq.s32.totalorder %s20, 0
      %p73 = por %p71, %p72
      %p74 = scmp.ne.s32.totalorder %s66, %s68
      %p75 = scmp.eq.s32.totalorder %s25, 7
      %p76 = por %p74, %p75
      %p77 = scmp.ne.s32.totalorder %s68, %s69
      %p78 = scmp.eq.s32.totalorder %s25, 0
      %p79 = por %p77, %p78
      %p80 = scmp.ne.s32.totalorder %s68, %s69
      %p81 = scmp.eq.s32.totalorder %s26, 7
      %p82 = por %p80, %p81
      %p84 = scmp.ne.s32.totalorder %s69, %s83
      %p85 = scmp.eq.s32.totalorder %s26, 0
      %p86 = por %p84, %p85
      %s88 = sadd.s32 %s87, 1
      %p91 = scmp.eq.s32.totalorder %s20, 7
      %p92 = scmp.ne.s32.totalorder %s87, %s89
      %p93 = scmp.eq.s32.totalorder %s20, 0
      %p94 = por %p92, %p93
      %p95 = scmp.ne.s32.totalorder %s87, %s89
      %p96 = scmp.eq.s32.totalorder %s25, 7
      %p97 = por %p95, %p96
      %p98 = scmp.ne.s32.totalorder %s89, %s90
      %p99 = scmp.eq.s32.totalorder %s25, 0
      %p100 = por %p98, %p99
      %p101 = scmp.ne.s32.totalorder %s89, %s90
      %p102 = scmp.eq.s32.totalorder %s26, 7
      %p103 = por %p101, %p102
      %p105 = scmp.ne.s32.totalorder %s90, %s104
      %p106 = scmp.eq.s32.totalorder %s26, 0
      %p107 = por %p105, %p106
      %s108 = ssub.s32 %s28, %s35
      %p109 = scmp.eq.s32.totalorder %s108, 0
      %s111 = sadd.s32 %s110, 1
      %s112 = scalar_select %p109, %s110, %s111
      %p115 = pneg %p109
      %p116 = scmp.eq.s32.totalorder %s20, 7
      %p117 = por %p115, %p116
      %p118 = scmp.ne.s32.totalorder %s110, %s113
      %p119 = scmp.eq.s32.totalorder %s20, 0
      %p120 = por %p118, %p119
      %p121 = scmp.ne.s32.totalorder %s110, %s113
      %p122 = scmp.eq.s32.totalorder %s25, 7
      %p123 = por %p121, %p122
      %p124 = scmp.ne.s32.totalorder %s113, %s114
      %p125 = scmp.eq.s32.totalorder %s25, 0
      %p126 = por %p124, %p125
      %p127 = scmp.ne.s32.totalorder %s113, %s114
      %p128 = scmp.eq.s32.totalorder %s26, 7
      %p129 = por %p127, %p128
      %p131 = scmp.ne.s32.totalorder %s114, %s130
      %p132 = scmp.eq.s32.totalorder %s26, 0
      %p133 = por %p131, %p132
      %s134 = ssub.s32 %s28, %s35
      %p135 = scmp.eq.s32.totalorder %s134, 0
      %s137 = sadd.s32 %s136, 1
      %s138 = scalar_select %p135, %s136, %s137
      %p141 = pneg %p135
      %p142 = scmp.eq.s32.totalorder %s20, 7
      %p143 = por %p141, %p142
      %p144 = scmp.ne.s32.totalorder %s136, %s139
      %p145 = scmp.eq.s32.totalorder %s20, 0
      %p146 = por %p144, %p145
      %p147 = scmp.ne.s32.totalorder %s136, %s139
      %p148 = scmp.eq.s32.totalorder %s25, 7
      %p149 = por %p147, %p148
      %p150 = scmp.ne.s32.totalorder %s139, %s140
      %p151 = scmp.eq.s32.totalorder %s25, 0
      %p152 = por %p150, %p151
      %p153 = scmp.ne.s32.totalorder %s139, %s140
      %p154 = scmp.eq.s32.totalorder %s26, 7
      %p155 = por %p153, %p154
      %p157 = scmp.ne.s32.totalorder %s140, %s156
      %p158 = scmp.eq.s32.totalorder %s26, 0
      %p159 = por %p157, %p158
      %s160 = ssub.s32 %s28, %s35
      %p161 = scmp.eq.s32.totalorder %s160, 0
      %s163 = sadd.s32 %s162, 1
      %s164 = scalar_select %p161, %s162, %s163
      %p167 = pneg %p161
      %p168 = scmp.eq.s32.totalorder %s20, 7
      %p169 = por %p167, %p168
      %p170 = scmp.ne.s32.totalorder %s162, %s165
      %p171 = scmp.eq.s32.totalorder %s20, 0
      %p172 = por %p170, %p171
      %p173 = scmp.ne.s32.totalorder %s162, %s165
      %p174 = scmp.eq.s32.totalorder %s25, 7
      %p175 = por %p173, %p174
      %p176 = scmp.ne.s32.totalorder %s165, %s166
      %p177 = scmp.eq.s32.totalorder %s25, 0
      %p178 = por %p176, %p177
      %p179 = scmp.ne.s32.totalorder %s165, %s166
      %p180 = scmp.eq.s32.totalorder %s26, 7
      %p181 = por %p179, %p180
      %p183 = scmp.ne.s32.totalorder %s166, %s182
      %p184 = scmp.eq.s32.totalorder %s26, 0
      %p185 = por %p183, %p184
      %s186 = ssub.s32 %s28, %s35
      %p187 = scmp.eq.s32.totalorder %s186, 0
      %s189 = sadd.s32 %s188, 1
      %s190 = scalar_select %p187, %s188, %s189
      %p193 = pneg %p187
      %p194 = scmp.eq.s32.totalorder %s20, 7
      %p195 = por %p193, %p194
      %p196 = scmp.ne.s32.totalorder %s188, %s191
      %p197 = scmp.eq.s32.totalorder %s20, 0
      %p198 = por %p196, %p197
      %p199 = scmp.ne.s32.totalorder %s188, %s191
      %p200 = scmp.eq.s32.totalorder %s25, 7
      %p201 = por %p199, %p200
      %p202 = scmp.ne.s32.totalorder %s191, %s192
      %p203 = scmp.eq.s32.totalorder %s25, 0
      %p204 = por %p202, %p203
      %p205 = scmp.ne.s32.totalorder %s191, %s192
      %p206 = scmp.eq.s32.totalorder %s26, 7
      %p207 = por %p205, %p206
      %p209 = scmp.ne.s32.totalorder %s192, %s208
      %p210 = scmp.eq.s32.totalorder %s26, 0
      %p211 = por %p209, %p210
      %s212 = ssub.s32 %s28, %s35
      %p213 = scmp.eq.s32.totalorder %s212, 0
      %s215 = sadd.s32 %s214, 1
      %s216 = scalar_select %p213, %s214, %s215
      %p219 = pneg %p213
      %p220 = scmp.eq.s32.totalorder %s20, 7
      %p221 = por %p219, %p220
      %p222 = scmp.ne.s32.totalorder %s214, %s217
      %p223 = scmp.eq.s32.totalorder %s20, 0
      %p224 = por %p222, %p223
      %p225 = scmp.ne.s32.totalorder %s214, %s217
      %p226 = scmp.eq.s32.totalorder %s25, 7
      %p227 = por %p225, %p226
      %p228 = scmp.ne.s32.totalorder %s217, %s218
      %p229 = scmp.eq.s32.totalorder %s25, 0
      %p230 = por %p228, %p229
      %p231 = scmp.ne.s32.totalorder %s217, %s218
      %p232 = scmp.eq.s32.totalorder %s26, 7
      %p233 = por %p231, %p232
      %p235 = scmp.ne.s32.totalorder %s218, %s234
      %p236 = scmp.eq.s32.totalorder %s26, 0
      %p237 = por %p235, %p236
      %s238 = ssub.s32 %s28, %s35
      %p239 = scmp.eq.s32.totalorder %s238, 0
      %s241 = sadd.s32 %s240, 1
      %s242 = scalar_select %p239, %s240, %s241
      %p245 = pneg %p239
      %p246 = scmp.eq.s32.totalorder %s20, 7
      %p247 = por %p245, %p246
      %p248 = scmp.ne.s32.totalorder %s240, %s243
      %p249 = scmp.eq.s32.totalorder %s20, 0
      %p250 = por %p248, %p249
      %p251 = scmp.ne.s32.totalorder %s240, %s243
      %p252 = scmp.eq.s32.totalorder %s25, 7
      %p253 = por %p251, %p252
      %p254 = scmp.ne.s32.totalorder %s243, %s244
      %p255 = scmp.eq.s32.totalorder %s25, 0
      %p256 = por %p254, %p255
      %p257 = scmp.ne.s32.totalorder %s243, %s244
      %p258 = scmp.eq.s32.totalorder %s26, 7
      %p259 = por %p257, %p258
      %p261 = scmp.ne.s32.totalorder %s244, %s260
      %p262 = scmp.eq.s32.totalorder %s26, 0
      %p263 = por %p261, %p262
      %s264 = ssub.s32 %s28, %s35
      %p265 = scmp.eq.s32.totalorder %s264, 0
      %s267 = sadd.s32 %s266, 1
      %s268 = scalar_select %p265, %s266, %s267
      %p271 = pneg %p265
      %p272 = scmp.eq.s32.totalorder %s20, 7
      %p273 = por %p271, %p272
      %p274 = scmp.ne.s32.totalorder %s266, %s269
      %p275 = scmp.eq.s32.totalorder %s20, 0
      %p276 = por %p274, %p275
      %p277 = scmp.ne.s32.totalorder %s266, %s269
      %p278 = scmp.eq.s32.totalorder %s25, 7
      %p279 = por %p277, %p278
      %p280 = scmp.ne.s32.totalorder %s269, %s270
      %p281 = scmp.eq.s32.totalorder %s25, 0
      %p282 = por %p280, %p281
      %p283 = scmp.ne.s32.totalorder %s269, %s270
      %p284 = scmp.eq.s32.totalorder %s26, 7
      %p285 = por %p283, %p284
      %p287 = scmp.ne.s32.totalorder %s270, %s286
      %p288 = scmp.eq.s32.totalorder %s26, 0
      %p289 = por %p287, %p288
      %s291 = sadd.s32 %s290, 1
      %p294 = scmp.eq.s32.totalorder %s20, 7
      %p295 = scmp.ne.s32.totalorder %s290, %s292
      %p296 = scmp.eq.s32.totalorder %s20, 0
      %p297 = por %p295, %p296
      %p298 = scmp.ne.s32.totalorder %s290, %s292
      %p299 = scmp.eq.s32.totalorder %s25, 7
      %p300 = por %p298, %p299
      %p301 = scmp.ne.s32.totalorder %s292, %s293
      %p302 = scmp.eq.s32.totalorder %s25, 0
      %p303 = por %p301, %p302
      %p304 = scmp.ne.s32.totalorder %s292, %s293
      %p305 = scmp.eq.s32.totalorder %s26, 7
      %p306 = por %p304, %p305
      %p308 = scmp.ne.s32.totalorder %s293, %s307
      %p309 = scmp.eq.s32.totalorder %s26, 0
      %p310 = por %p308, %p309
      %s311 = ssub.s32 %s27, %s39
      %p312 = scmp.eq.s32.totalorder %s311, 0
      %s314 = sadd.s32 %s313, 1
      %s315 = scalar_select %p312, %s313, %s314
      %p318 = pneg %p312
      %p319 = scmp.eq.s32.totalorder %s20, 7
      %p320 = por %p318, %p319
      %p321 = scmp.ne.s32.totalorder %s313, %s316
      %p322 = scmp.eq.s32.totalorder %s20, 0
      %p323 = por %p321, %p322
      %p324 = scmp.ne.s32.totalorder %s313, %s316
      %p325 = scmp.eq.s32.totalorder %s25, 7
      %p326 = por %p324, %p325
      %p327 = scmp.ne.s32.totalorder %s316, %s317
      %p328 = scmp.eq.s32.totalorder %s25, 0
      %p329 = por %p327, %p328
      %p330 = scmp.ne.s32.totalorder %s316, %s317
      %p331 = scmp.eq.s32.totalorder %s26, 7
      %p332 = por %p330, %p331
      %p334 = scmp.ne.s32.totalorder %s317, %s333
      %p335 = scmp.eq.s32.totalorder %s26, 0
      %p336 = por %p334, %p335
      %p337 = scmp.le.s32.totalorder 1, %s20
      %p338 = scmp.lt.s32.totalorder %s20, 9
      %p339 = pnand %p337, %p338
      %p340 = pneg %p339
      // Predicated region
      $region9: #{tpu_custom_call.1} parent=5 // pred_check
        _
      $region10: #{tpu_custom_call.1} parent=5 // pred_check_branch
        %342 = sbr.rel (%p339) target = $region12
      $region11: #{tpu_custom_call.1} parent=5 // pred_region
        %s343 = ssub.s32 %s20, 1
        // Predicated region
        $region13: #{tpu_custom_call.1} parent=11 // pred_check
          %p344 = pneg %p79
        $region14: #{tpu_custom_call.1} parent=11 // pred_check_branch
          %346 = sbr.rel (%p344) target = $region16
        $region15: #{tpu_custom_call.1} parent=11 // pred_region
          _
        $region16: #{tpu_custom_call.1} parent=11 // pred_fallthru
          _
        // Predicated region
        $region17: #{tpu_custom_call.1} parent=11 // pred_check
          %p347 = pneg %p100
        $region18: #{tpu_custom_call.1} parent=11 // pred_check_branch
          %349 = sbr.rel (%p347) target = $region20
        $region19: #{tpu_custom_call.1} parent=11 // pred_region
          _
        $region20: #{tpu_custom_call.1} parent=11 // pred_fallthru
          _
        // Predicated region
        $region21: #{tpu_custom_call.1} parent=11 // pred_check
          %p350 = pneg %p303
        $region22: #{tpu_custom_call.1} parent=11 // pred_check_branch
          %352 = sbr.rel (%p350) target = $region24
        $region23: #{tpu_custom_call.1} parent=11 // pred_region
          _
        $region24: #{tpu_custom_call.1} parent=11 // pred_fallthru
          _
      $region12: #{tpu_custom_call.1} parent=5 // pred_fallthru
        _
      %p353 = scmp.lt.s32.totalorder %s20, 8
      // Predicated region
      $region25: #{tpu_custom_call.1} parent=5 // pred_check
        %p354 = pneg %p353
      $region26: #{tpu_custom_call.1} parent=5 // pred_check_branch
        %356 = sbr.rel (%p354) target = $region28
      $region27: #{tpu_custom_call.1} parent=5 // pred_region
        // Predicated region
        $region29: #{tpu_custom_call.1} parent=27 // pred_check
          %p357 = pneg %p52
        $region30: #{tpu_custom_call.1} parent=27 // pred_check_branch
          %359 = sbr.rel (%p357) target = $region32
        $region31: #{tpu_custom_call.1} parent=27 // pred_region
          %p360 = scmp.lt.s32.totalorder %s27, 1
          %s361 = scalar_select %p360, %s27, 1
          %s362 = smul.addr %s361, 2
          %s363 = smul.addr %s362, 8
          %s364 = scalar_lea.vmem %s0, %s363
        $region32: #{tpu_custom_call.1} parent=27 // pred_fallthru
          _
        // Predicated region
        $region33: #{tpu_custom_call.1} parent=27 // pred_check
          %p365 = pneg %p120
        $region34: #{tpu_custom_call.1} parent=27 // pred_check_branch
          %367 = sbr.rel (%p365) target = $region36
        $region35: #{tpu_custom_call.1} parent=27 // pred_region
          %p368 = scmp.lt.s32.totalorder %s28, 3
          %s369 = scalar_select %p368, %s28, 3
          %s370 = smul.addr %s369, 16
          %s371 = smul.addr %s370, 4
          %s372 = scalar_lea.vmem %s3, %s371
        $region36: #{tpu_custom_call.1} parent=27 // pred_fallthru
          _
        // Predicated region
        $region37: #{tpu_custom_call.1} parent=27 // pred_check
          %p373 = pneg %p146
        $region38: #{tpu_custom_call.1} parent=27 // pred_check_branch
          %375 = sbr.rel (%p373) target = $region40
        $region39: #{tpu_custom_call.1} parent=27 // pred_region
          %p376 = scmp.lt.s32.totalorder %s28, 3
          %s377 = scalar_select %p376, %s28, 3
          %s378 = smul.addr %s377, 16
          %s379 = smul.addr %s378, 4
          %s380 = scalar_lea.vmem %s4, %s379
        $region40: #{tpu_custom_call.1} parent=27 // pred_fallthru
          _
        // Predicated region
        $region41: #{tpu_custom_call.1} parent=27 // pred_check
          %p381 = pneg %p172
        $region42: #{tpu_custom_call.1} parent=27 // pred_check_branch
          %383 = sbr.rel (%p381) target = $region44
        $region43: #{tpu_custom_call.1} parent=27 // pred_region
          %p384 = scmp.lt.s32.totalorder %s28, 3
          %s385 = scalar_select %p384, %s28, 3
          %s386 = smul.addr %s385, 16
          %s387 = smul.addr %s386, 4
          %s388 = scalar_lea.vmem %s5, %s387
        $region44: #{tpu_custom_call.1} parent=27 // pred_fallthru
          _
        // Predicated region
        $region45: #{tpu_custom_call.1} parent=27 // pred_check
          %p389 = pneg %p198
        $region46: #{tpu_custom_call.1} parent=27 // pred_check_branch
          %391 = sbr.rel (%p389) target = $region48
        $region47: #{tpu_custom_call.1} parent=27 // pred_region
          %p392 = scmp.lt.s32.totalorder %s28, 3
          %s393 = scalar_select %p392, %s28, 3
          %s394 = scalar_lea.vmem %s6, %s393
        $region48: #{tpu_custom_call.1} parent=27 // pred_fallthru
          _
        // Predicated region
        $region49: #{tpu_custom_call.1} parent=27 // pred_check
          %p395 = pneg %p224
        $region50: #{tpu_custom_call.1} parent=27 // pred_check_branch
          %397 = sbr.rel (%p395) target = $region52
        $region51: #{tpu_custom_call.1} parent=27 // pred_region
          %p398 = scmp.lt.s32.totalorder %s28, 3
          %s399 = scalar_select %p398, %s28, 3
          %s400 = scalar_lea.vmem %s7, %s399
        $region52: #{tpu_custom_call.1} parent=27 // pred_fallthru
          _
        // Predicated region
        $region53: #{tpu_custom_call.1} parent=27 // pred_check
          %p401 = pneg %p250
        $region54: #{tpu_custom_call.1} parent=27 // pred_check_branch
          %403 = sbr.rel (%p401) target = $region56
        $region55: #{tpu_custom_call.1} parent=27 // pred_region
          %p404 = scmp.lt.s32.totalorder %s28, 3
          %s405 = scalar_select %p404, %s28, 3
          %s406 = scalar_lea.vmem %s8, %s405
        $region56: #{tpu_custom_call.1} parent=27 // pred_fallthru
          _
        // Predicated region
        $region57: #{tpu_custom_call.1} parent=27 // pred_check
          %p407 = pneg %p276
        $region58: #{tpu_custom_call.1} parent=27 // pred_check_branch
          %409 = sbr.rel (%p407) target = $region60
        $region59: #{tpu_custom_call.1} parent=27 // pred_region
          %p410 = scmp.lt.s32.totalorder %s28, 3
          %s411 = scalar_select %p410, %s28, 3
          %s412 = smul.addr %s411, 4
          %s413 = smul.addr %s412, 4
          %s414 = scalar_lea.vmem %s9, %s413
        $region60: #{tpu_custom_call.1} parent=27 // pred_fallthru
          _
      $region28: #{tpu_custom_call.1} parent=5 // pred_fallthru
        _
      %p415 = scmp.le.s32.totalorder 1, %s20
      %p416 = scmp.lt.s32.totalorder %s20, 9
      %p417 = pnand %p415, %p416
      %p418 = pneg %p417
      // Predicated region
      $region61: #{tpu_custom_call.1} parent=5 // pred_check
        _
      $region62: #{tpu_custom_call.1} parent=5 // pred_check_branch
        %420 = sbr.rel (%p417) target = $region64
      $region63: #{tpu_custom_call.1} parent=5 // pred_region
        %s421 = ssub.s32 %s20, 1
        %p422 = scmp.lt.s32.totalorder %s29, 1
        %s423 = scalar_select %p422, %s29, 1
        %s424 = smul.addr %s423, 2
        %s425 = smul.addr %s424, 8
        %s426 = scalar_lea.vmem %s0, %s425
        %p427 = pneg %p58
        %p428 = pneg %p55
        %p429 = pneg %p79
        %p430 = pneg %p76
        %p431 = pneg %p100
        %p432 = pneg %p97
        %p433 = scmp.lt.s32.totalorder %s30, 3
        %s434 = scalar_select %p433, %s30, 3
        %s435 = smul.addr %s434, 16
        %s436 = smul.addr %s435, 4
        %s437 = scalar_lea.vmem %s3, %s436
        %p438 = pneg %p126
        %p439 = pneg %p123
        %p440 = scmp.lt.s32.totalorder %s30, 3
        %s441 = scalar_select %p440, %s30, 3
        %s442 = smul.addr %s441, 16
        %s443 = smul.addr %s442, 4
        %s444 = scalar_lea.vmem %s4, %s443
        %p445 = pneg %p152
        %p446 = pneg %p149
        %p447 = scmp.lt.s32.totalorder %s30, 3
        %s448 = scalar_select %p447, %s30, 3
        %s449 = smul.addr %s448, 16
        %s450 = smul.addr %s449, 4
        %s451 = scalar_lea.vmem %s5, %s450
        %p452 = pneg %p178
        %p453 = pneg %p175
        %p454 = scmp.lt.s32.totalorder %s30, 3
        %s455 = scalar_select %p454, %s30, 3
        %s456 = scalar_lea.vmem %s6, %s455
        %p457 = pneg %p204
        %p458 = pneg %p201
        %p459 = scmp.lt.s32.totalorder %s30, 3
        %s460 = scalar_select %p459, %s30, 3
        %s461 = scalar_lea.vmem %s7, %s460
        %p462 = pneg %p230
        %p463 = pneg %p227
        %p464 = scmp.lt.s32.totalorder %s30, 3
        %s465 = scalar_select %p464, %s30, 3
        %s466 = scalar_lea.vmem %s8, %s465
        %p467 = pneg %p256
        %p468 = pneg %p253
        %p469 = scmp.lt.s32.totalorder %s30, 3
        %s470 = scalar_select %p469, %s30, 3
        %s471 = smul.addr %s470, 4
        %s472 = smul.addr %s471, 4
        %s473 = scalar_lea.vmem %s9, %s472
        %p474 = pneg %p282
        %p475 = pneg %p279
        %p476 = pneg %p303
        %p477 = pneg %p300
        %p478 = pneg %p329
        %p479 = pneg %p326
        %s480 = sand.u32 %s316, 1
        %s481 = scalar_lea.sflag [#allocation4], %s480
        %s482 = sand.u32 %s316, 1
        %s483 = smul.addr %s482, 16
        %s484 = scalar_lea.vmem [#allocation3], %s483
        %p485 = scmp.lt.s32.totalorder %s29, 1
        %s486 = scalar_select %p485, %s29, 1
        %s487 = smul.addr %s486, 2
        %s488 = smul.addr %s487, 8
        %s489 = scalar_lea.vmem %s0, %s488
        %p490 = scmp.lt.s32.totalorder %s30, 3
        %s491 = scalar_select %p490, %s30, 3
        %s492 = smul.addr %s491, 16
        %s493 = smul.addr %s492, 4
        %s494 = scalar_lea.vmem %s3, %s493
        %p495 = scmp.lt.s32.totalorder %s30, 3
        %s496 = scalar_select %p495, %s30, 3
        %s497 = smul.addr %s496, 16
        %s498 = smul.addr %s497, 4
        %s499 = scalar_lea.vmem %s4, %s498
        %p500 = scmp.lt.s32.totalorder %s30, 3
        %s501 = scalar_select %p500, %s30, 3
        %s502 = smul.addr %s501, 16
        %s503 = smul.addr %s502, 4
        %s504 = scalar_lea.vmem %s5, %s503
        %p505 = scmp.lt.s32.totalorder %s30, 3
        %s506 = scalar_select %p505, %s30, 3
        %s507 = scalar_lea.vmem %s6, %s506
        %p508 = scmp.lt.s32.totalorder %s30, 3
        %s509 = scalar_select %p508, %s30, 3
        %s510 = scalar_lea.vmem %s7, %s509
        %p511 = scmp.lt.s32.totalorder %s30, 3
        %s512 = scalar_select %p511, %s30, 3
        %s513 = scalar_lea.vmem %s8, %s512
        %p514 = scmp.lt.s32.totalorder %s30, 3
        %s515 = scalar_select %p514, %s30, 3
        %s516 = smul.addr %s515, 4
        %s517 = smul.addr %s516, 4
        %s518 = scalar_lea.vmem %s9, %s517
        %p520 = scmp.eq.s32.totalorder %s30, 0
        // Predicated region
        $region65: #{tpu_custom_call.1} parent=63 // pred_check
          %p521 = pneg %p520
        $region66: #{tpu_custom_call.1} parent=63 // pred_check_branch
          %523 = sbr.rel (%p521) target = $region68
        $region67: #{tpu_custom_call.1} parent=63 // pred_region
          %v524 = vld [vmem:[%s489] sm:$0xff]
          %v525 = vld [vmem:[%s489 + $0x8] sm:$0xff]
          %526 = vadd.xlane.f32.xlu0 %v524
          %v527 = vpop.xlane.xlu0 %526
          %528 = vadd.xlane.f32.xlu0 %v525
          %v529 = vpop.xlane.xlu0 %528
          %v530 = vrcp.pop 128.0
          %v531 = vmul.f32 128.0, %v530
          %v532 = vsub.f32 1.0, %v531
          %v533 = vmul.f32 %v530, %v532
          %v534 = vadd.f32 %v530, %v533
          %vm535 = vweird.f32 %v530
          %v536 = vsel %vm535, %v530, %v534
          %v537 = vmul.f32 %v527, %v536
          %v538 = vmul.f32 %v529, %v536
          %v539 = vsub.f32 %v524, %v537
          %v540 = vsub.f32 %v525, %v538
          %v541 = vmul.f32 %v539, %v539
          %v542 = vmul.f32 %v540, %v540
          %543 = vadd.xlane.f32.xlu0 %v541
          %v544 = vpop.xlane.xlu0 %543
          %545 = vadd.xlane.f32.xlu0 %v542
          %v546 = vpop.xlane.xlu0 %545
          %v547 = vmul.f32 %v544, %v536
          %v548 = vmul.f32 %v546, %v536
          %v549 = vadd.f32 %v547, 1e-05
          %v550 = vadd.f32 %v548, 1e-05
          %v551 = vrsqrt.pop %v549
          %v552 = vmul.f32 %v551, %v549
          %v553 = vmul.f32 %v552, %v551
          %v554 = vmul.f32 0.5, %v553
          %v555 = vsub.f32 1.5, %v554
          %v556 = vmul.f32 %v551, %v555
          %vm557 = vweird.f32 %v549
          %vm558 = vweird.f32 %v551
          %vm559 = vmor %vm557, %vm558
          %v560 = vsel %vm559, %v551, %v556
          %v561 = vrsqrt.pop %v550
          %v562 = vmul.f32 %v561, %v550
          %v563 = vmul.f32 %v562, %v561
          %v564 = vmul.f32 0.5, %v563
          %v565 = vsub.f32 1.5, %v564
          %v566 = vmul.f32 %v561, %v565
          %vm567 = vweird.f32 %v550
          %vm568 = vweird.f32 %v561
          %vm569 = vmor %vm567, %vm568
          %v570 = vsel %vm569, %v561, %v566
          %v571 = vmul.f32 %v539, %v560
          %v572 = vmul.f32 %v540, %v570
          %v573 = vld [vmem:[%s1] sm:$0x1]
          %v575 = vperm.slane %v573, 0
          %v577 = vmul.f32 %v571, %v575
          %v578 = vmul.f32 %v572, %v575
          %v579 = vld [vmem:[%s2] sm:$0x1]
          %v581 = vperm.slane %v579, 0
          %v583 = vadd.f32 %v577, %v581
          %v584 = vadd.f32 %v578, %v581
          %v585 = vpack.c.bf16 %v583, %v583
          %v586 = vpack.c.bf16 %v584, %v584
          %587 = vst [vmem:[#allocation2] sm:$0xf] %v585
          %588 = vst [vmem:[#allocation2 + $0x4] sm:$0xf] %v586
          %v589 = vld [vmem:[%s10] sm:$0x1]
          %v591 = vperm.slane %v589, 0
          %593 = vst [vmem:[%s484] sm:$0xff] %v591
          %594 = vst [vmem:[%s484 + $0x8] sm:$0xff] %v591
        $region68: #{tpu_custom_call.1} parent=63 // pred_fallthru
          _
        %v595 = vld [vmem:[#allocation2] sm:$0xf]
        %v596 = vld [vmem:[#allocation2 + $0x4] sm:$0xf]
        %v597 = vld [vmem:[%s494] sm:$0xf]
        %v598 = vld [vmem:[%s494 + $0x4] sm:$0xf]
        %v599 = vld [vmem:[%s494 + $0x8] sm:$0xf]
        %v600 = vld [vmem:[%s494 + $0xc] sm:$0xf]
        %v601 = vld [vmem:[%s494 + $0x10] sm:$0xf]
        %v602 = vld [vmem:[%s494 + $0x14] sm:$0xf]
        %v603 = vld [vmem:[%s494 + $0x18] sm:$0xf]
        %v604 = vld [vmem:[%s494 + $0x1c] sm:$0xf]
        %v605 = vld [vmem:[%s494 + $0x20] sm:$0xf]
        %v606 = vld [vmem:[%s494 + $0x24] sm:$0xf]
        %v607 = vld [vmem:[%s494 + $0x28] sm:$0xf]
        %v608 = vld [vmem:[%s494 + $0x2c] sm:$0xf]
        %v609 = vld [vmem:[%s494 + $0x30] sm:$0xf]
        %v610 = vld [vmem:[%s494 + $0x34] sm:$0xf]
        %v611 = vld [vmem:[%s494 + $0x38] sm:$0xf]
        %v612 = vld [vmem:[%s494 + $0x3c] sm:$0xf]
        %v613 = vld [vmem:[%s507] sm:$0x1]
        %v615 = vperm.slane %v613, 0
        %v619 = vunpack.c.l.b16 %v595
        %v620 = vunpack.c.l.b16 %v596
        %v621 = vpack.c.b16 %v620, %v619
        %v639 = vunpack.c.l.b16 %v597
        %v640 = vunpack.c.l.b16 %v598
        %v641 = vunpack.c.l.b16 %v599
        %v642 = vunpack.c.l.b16 %v600
        %v643 = vunpack.c.l.b16 %v601
        %v644 = vunpack.c.l.b16 %v602
        %v645 = vunpack.c.l.b16 %v603
        %v646 = vunpack.c.l.b16 %v604
        %v647 = vunpack.c.l.b16 %v605
        %v648 = vunpack.c.l.b16 %v606
        %v649 = vunpack.c.l.b16 %v607
        %v650 = vunpack.c.l.b16 %v608
        %v651 = vunpack.c.l.b16 %v609
        %v652 = vunpack.c.l.b16 %v610
        %v653 = vunpack.c.l.b16 %v611
        %v654 = vunpack.c.l.b16 %v612
        %v655 = vpack.c.b16 %v640, %v639
        %v656 = vpack.c.b16 %v642, %v641
        %v657 = vpack.c.b16 %v644, %v643
        %v658 = vpack.c.b16 %v646, %v645
        %v659 = vpack.c.b16 %v648, %v647
        %v660 = vpack.c.b16 %v650, %v649
        %v661 = vpack.c.b16 %v652, %v651
        %v662 = vpack.c.b16 %v654, %v653
        %671 = vmatpush.bf16.msra.mxu0 %v662
        %672 = vmatpush.bf16.msra.mxu0 %v661
        %673 = vmatpush.bf16.msra.mxu0 %v660
        %674 = vmatpush.bf16.msra.mxu0 %v659
        %675 = vmatpush.bf16.msra.mxu0 %v658
        %676 = vmatpush.bf16.msra.mxu0 %v657
        %677 = vmatpush.bf16.msra.mxu0 %v656
        %678 = vmatpush.bf16.msra.mxu0 %v655
        %679 = vmatmul.bf16.gmra.mxu0 %v621
        %v680 = vpop.f32.mrf.mxu0
        %v681 = vadd.f32 %v615, %v680
        %v682 = vpop.f32.mrf.mxu0
        %v683 = vadd.f32 %v615, %v682
        %684 = vdwg.mxu0
        %v685 = vld [vmem:[%s499] sm:$0xf]
        %v686 = vld [vmem:[%s499 + $0x4] sm:$0xf]
        %v687 = vld [vmem:[%s499 + $0x8] sm:$0xf]
        %v688 = vld [vmem:[%s499 + $0xc] sm:$0xf]
        %v689 = vld [vmem:[%s499 + $0x10] sm:$0xf]
        %v690 = vld [vmem:[%s499 + $0x14] sm:$0xf]
        %v691 = vld [vmem:[%s499 + $0x18] sm:$0xf]
        %v692 = vld [vmem:[%s499 + $0x1c] sm:$0xf]
        %v693 = vld [vmem:[%s499 + $0x20] sm:$0xf]
        %v694 = vld [vmem:[%s499 + $0x24] sm:$0xf]
        %v695 = vld [vmem:[%s499 + $0x28] sm:$0xf]
        %v696 = vld [vmem:[%s499 + $0x2c] sm:$0xf]
        %v697 = vld [vmem:[%s499 + $0x30] sm:$0xf]
        %v698 = vld [vmem:[%s499 + $0x34] sm:$0xf]
        %v699 = vld [vmem:[%s499 + $0x38] sm:$0xf]
        %v700 = vld [vmem:[%s499 + $0x3c] sm:$0xf]
        %v701 = vld [vmem:[%s510] sm:$0x1]
        %v703 = vperm.slane %v701, 0
        %v721 = vunpack.c.l.b16 %v685
        %v722 = vunpack.c.l.b16 %v686
        %v723 = vunpack.c.l.b16 %v687
        %v724 = vunpack.c.l.b16 %v688
        %v725 = vunpack.c.l.b16 %v689
        %v726 = vunpack.c.l.b16 %v690
        %v727 = vunpack.c.l.b16 %v691
        %v728 = vunpack.c.l.b16 %v692
        %v729 = vunpack.c.l.b16 %v693
        %v730 = vunpack.c.l.b16 %v694
        %v731 = vunpack.c.l.b16 %v695
        %v732 = vunpack.c.l.b16 %v696
        %v733 = vunpack.c.l.b16 %v697
        %v734 = vunpack.c.l.b16 %v698
        %v735 = vunpack.c.l.b16 %v699
        %v736 = vunpack.c.l.b16 %v700
        %v737 = vpack.c.b16 %v722, %v721
        %v738 = vpack.c.b16 %v724, %v723
        %v739 = vpack.c.b16 %v726, %v725
        %v740 = vpack.c.b16 %v728, %v727
        %v741 = vpack.c.b16 %v730, %v729
        %v742 = vpack.c.b16 %v732, %v731
        %v743 = vpack.c.b16 %v734, %v733
        %v744 = vpack.c.b16 %v736, %v735
        %753 = vmatpush.bf16.msra.mxu0 %v744
        %754 = vmatpush.bf16.msra.mxu0 %v743
        %755 = vmatpush.bf16.msra.mxu0 %v742
        %756 = vmatpush.bf16.msra.mxu0 %v741
        %757 = vmatpush.bf16.msra.mxu0 %v740
        %758 = vmatpush.bf16.msra.mxu0 %v739
        %759 = vmatpush.bf16.msra.mxu0 %v738
        %760 = vmatpush.bf16.msra.mxu0 %v737
        %761 = vmatmul.bf16.gmra.mxu0 %v621
        %v762 = vpop.f32.mrf.mxu0
        %v763 = vadd.f32 %v703, %v762
        %v764 = vpop.f32.mrf.mxu0
        %v765 = vadd.f32 %v703, %v764
        %766 = vdwg.mxu0
        %v767 = vld [vmem:[%s504] sm:$0xf]
        %v768 = vld [vmem:[%s504 + $0x4] sm:$0xf]
        %v769 = vld [vmem:[%s504 + $0x8] sm:$0xf]
        %v770 = vld [vmem:[%s504 + $0xc] sm:$0xf]
        %v771 = vld [vmem:[%s504 + $0x10] sm:$0xf]
        %v772 = vld [vmem:[%s504 + $0x14] sm:$0xf]
        %v773 = vld [vmem:[%s504 + $0x18] sm:$0xf]
        %v774 = vld [vmem:[%s504 + $0x1c] sm:$0xf]
        %v775 = vld [vmem:[%s504 + $0x20] sm:$0xf]
        %v776 = vld [vmem:[%s504 + $0x24] sm:$0xf]
        %v777 = vld [vmem:[%s504 + $0x28] sm:$0xf]
        %v778 = vld [vmem:[%s504 + $0x2c] sm:$0xf]
        %v779 = vld [vmem:[%s504 + $0x30] sm:$0xf]
        %v780 = vld [vmem:[%s504 + $0x34] sm:$0xf]
        %v781 = vld [vmem:[%s504 + $0x38] sm:$0xf]
        %v782 = vld [vmem:[%s504 + $0x3c] sm:$0xf]
        %v783 = vld [vmem:[%s513] sm:$0x1]
        %v785 = vperm.slane %v783, 0
        %v803 = vunpack.c.l.b16 %v767
        %v804 = vunpack.c.l.b16 %v768
        %v805 = vunpack.c.l.b16 %v769
        %v806 = vunpack.c.l.b16 %v770
        %v807 = vunpack.c.l.b16 %v771
        %v808 = vunpack.c.l.b16 %v772
        %v809 = vunpack.c.l.b16 %v773
        %v810 = vunpack.c.l.b16 %v774
        %v811 = vunpack.c.l.b16 %v775
        %v812 = vunpack.c.l.b16 %v776
        %v813 = vunpack.c.l.b16 %v777
        %v814 = vunpack.c.l.b16 %v778
        %v815 = vunpack.c.l.b16 %v779
        %v816 = vunpack.c.l.b16 %v780
        %v817 = vunpack.c.l.b16 %v781
        %v818 = vunpack.c.l.b16 %v782
        %v819 = vpack.c.b16 %v804, %v803
        %v820 = vpack.c.b16 %v806, %v805
        %v821 = vpack.c.b16 %v808, %v807
        %v822 = vpack.c.b16 %v810, %v809
        %v823 = vpack.c.b16 %v812, %v811
        %v824 = vpack.c.b16 %v814, %v813
        %v825 = vpack.c.b16 %v816, %v815
        %v826 = vpack.c.b16 %v818, %v817
        %835 = vmatpush.bf16.msra.mxu0 %v826
        %836 = vmatpush.bf16.msra.mxu0 %v825
        %837 = vmatpush.bf16.msra.mxu0 %v824
        %838 = vmatpush.bf16.msra.mxu0 %v823
        %839 = vmatpush.bf16.msra.mxu0 %v822
        %840 = vmatpush.bf16.msra.mxu0 %v821
        %841 = vmatpush.bf16.msra.mxu0 %v820
        %842 = vmatpush.bf16.msra.mxu0 %v819
        %843 = vmatmul.bf16.gmra.mxu0 %v621
        %v844 = vpop.f32.mrf.mxu0
        %v845 = vadd.f32 %v785, %v844
        %v846 = vpop.f32.mrf.mxu0
        %v847 = vadd.f32 %v785, %v846
        %848 = vdwg.mxu0
        %v849 = vpack.c.bf16 %v683, %v681
        %v850 = vpack.c.bf16 %v765, %v763
        %vm851 = vcmask 261120
        %v853 = vsel %vm851, %v849, 0
        %v856 = vsel %vm851, %v850, 0
        %858 = vmatpush.bf16.xpose.msra.mxu0 0
        %859 = vmatpush.bf16.xpose.msra.mxu0 0
        %860 = vmatpush.bf16.xpose.msra.mxu0 0
        %861 = vmatpush.bf16.xpose.msra.mxu0 0
        %862 = vmatpush.bf16.xpose.msra.mxu0 0
        %863 = vmatpush.bf16.xpose.msra.mxu0 0
        %864 = vmatpush.bf16.xpose.msra.mxu0 0
        %865 = vmatpush.bf16.xpose.msra.mxu0 %v856
        %866 = vmatmul.bf16.gmra.mxu0 %v853
        %v867 = vpop.f32.mrf.mxu0
        %v868 = vadd.f32 0.0, %v867
        %v869 = vpop.f32.mrf.mxu0
        %v870 = vadd.f32 0.0, %v869
        %871 = vdwg.mxu0
        %vm872 = vcmask 130048
        %v873 = vsel %vm872, %v868, -inf
        %874 = vmax.xlane.f32.xlu0 %v873
        %v875 = vpop.xlane.xlu0 %874
        %v876 = vsel %vm872, %v870, -inf
        %877 = vmax.xlane.f32.xlu0 %v876
        %v878 = vpop.xlane.xlu0 %877
        %v879 = vsub.f32 %v868, %v875
        %v880 = vsub.f32 %v870, %v878
        %v881 = vmul.f32 %v879, 1.442695
        %v882 = vpow.pop %v881
        %v883 = vmul.f32 %v880, 1.442695
        %v884 = vpow.pop %v883
        %v885 = vsel %vm872, %v882, 0.0
        %886 = vadd.xlane.f32.xlu0 %v885
        %v887 = vpop.xlane.xlu0 %886
        %v888 = vsel %vm872, %v884, 0.0
        %889 = vadd.xlane.f32.xlu0 %v888
        %v890 = vpop.xlane.xlu0 %889
        %v891 = vrcp.pop %v887
        %v892 = vrcp.pop %v890
        %v893 = vmul.f32 %v882, %v891
        %v894 = vmul.f32 %v884, %v892
        %v895 = vpack.c.bf16 %v894, %v893
        %v896 = vpack.c.bf16 %v847, %v845
        %v898 = vsel %vm872, %v895, 0
        %900 = vmatpush.bf16.msra.mxu0 0
        %901 = vmatpush.bf16.msra.mxu0 0
        %902 = vmatpush.bf16.msra.mxu0 0
        %903 = vmatpush.bf16.msra.mxu0 0
        %904 = vmatpush.bf16.msra.mxu0 0
        %905 = vmatpush.bf16.msra.mxu0 0
        %906 = vmatpush.bf16.msra.mxu0 0
        %907 = vmatpush.bf16.msra.mxu0 %v896
        %908 = vmatmul.bf16.gmra.mxu0 %v898
        %v909 = vpop.f32.mrf.mxu0
        %v910 = vadd.f32 0.0, %v909
        %v911 = vpop.f32.mrf.mxu0
        %v912 = vadd.f32 0.0, %v911
        %913 = vdwg.mxu0
        %v914 = vld [vmem:[%s484] sm:$0xff]
        %v915 = vld [vmem:[%s484 + $0x8] sm:$0xff]
        %v916 = vpack.c.bf16 %v912, %v910
        %v917 = vld [vmem:[%s518] sm:$0xf]
        %v918 = vld [vmem:[%s518 + $0x4] sm:$0xf]
        %v919 = vld [vmem:[%s518 + $0x8] sm:$0xf]
        %v920 = vld [vmem:[%s518 + $0xc] sm:$0xf]
        %v925 = vunpack.c.l.b16 %v917
        %v926 = vunpack.c.l.b16 %v918
        %v927 = vunpack.c.l.b16 %v919
        %v928 = vunpack.c.l.b16 %v920
        %v929 = vpack.c.b16 %v926, %v925
        %v930 = vpack.c.b16 %v928, %v927
        %v934 = vsel %vm851, %v916, 0
        %936 = vmatpush.bf16.msra.mxu0 0
        %937 = vmatpush.bf16.msra.mxu0 0
        %938 = vmatpush.bf16.msra.mxu0 0
        %939 = vmatpush.bf16.msra.mxu0 0
        %940 = vmatpush.bf16.msra.mxu0 0
        %941 = vmatpush.bf16.msra.mxu0 0
        %942 = vmatpush.bf16.msra.mxu0 %v930
        %943 = vmatpush.bf16.msra.mxu0 %v929
        %944 = vmatmul.bf16.gmra.mxu0 %v934
        %v945 = vpop.f32.mrf.mxu0
        %v946 = vadd.f32 0.0, %v945
        %v947 = vpop.f32.mrf.mxu0
        %v948 = vadd.f32 0.0, %v947
        %949 = vdwg.mxu0
        %v950 = vadd.f32 %v914, %v946
        %v951 = vadd.f32 %v915, %v948
        %952 = vst [vmem:[%s484] sm:$0xff] %v950
        %953 = vst [vmem:[%s484 + $0x8] sm:$0xff] %v951
        %s954 = sand.u32 %s316, 1
        %s955 = scalar_lea.sflag [#allocation4], %s954
        %s956 = sand.u32 %s316, 1
        %s957 = smul.addr %s956, 16
        %s958 = scalar_lea.vmem [#allocation3], %s957
        // Predicated region
        $region69: #{tpu_custom_call.1} parent=63 // pred_check
          %p959 = pneg %p326
        $region70: #{tpu_custom_call.1} parent=63 // pred_check_branch
          %961 = sbr.rel (%p959) target = $region72
        $region71: #{tpu_custom_call.1} parent=63 // pred_region
          %963 = vsyncadd %s955, 0
          %s964 = smul.addr %s29, 2
          %s965 = smul.addr %s964, 8
          %s966 = scalar_lea.hbm %s11, %s965
          %s967 = sshll.u32 %s958, 4
          %s968 = int_to_ptr.vmem [resolvable:$true] %s967
          %s969 = sshll.u32 %s966, 4
          %s970 = int_to_ptr.hbm [resolvable:$true] %s969
          %975 = dma.vmem_to_hbm [thread:$0]  %s968, 256, %s970, %s955, 128, 128, 8
        $region72: #{tpu_custom_call.1} parent=63 // pred_fallthru
          _
      $region64: #{tpu_custom_call.1} parent=5 // pred_fallthru
        _
      %p976 = scmp.le.s32.totalorder 2, %s20
      // Predicated region
      $region73: #{tpu_custom_call.1} parent=5 // pred_check
        %p977 = pneg %p976
      $region74: #{tpu_custom_call.1} parent=5 // pred_check_branch
        %979 = sbr.rel (%p977) target = $region76
      $region75: #{tpu_custom_call.1} parent=5 // pred_region
        %s980 = ssub.s32 %s20, 2
        // Predicated region
        $region77: #{tpu_custom_call.1} parent=75 // pred_check
          %p981 = pneg %p332
        $region78: #{tpu_custom_call.1} parent=75 // pred_check_branch
          %983 = sbr.rel (%p981) target = $region80
        $region79: #{tpu_custom_call.1} parent=75 // pred_region
          %s984 = sand.u32 %s317, 1
          %s985 = scalar_lea.sflag [#allocation4], %s984
          %s986 = sand.u32 %s317, 1
          %s987 = smul.addr %s986, 16
          %s988 = scalar_lea.vmem [#allocation3], %s987
          %990 = dma.done %s985, 256
        $region80: #{tpu_custom_call.1} parent=75 // pred_fallthru
          _
      $region76: #{tpu_custom_call.1} parent=5 // pred_fallthru
        _
    $region6: #{tpu_custom_call.1} parent=1 // loop_footer
      %s24 = sadd.s32 1, %s20
    $region7: #{tpu_custom_call.1} parent=1 // loop_footer_branch
      %19 = sbr.rel target = $region3
    $region8: #{tpu_custom_call.1} parent=1 // loop_exit
      _
    %991 = vsyncpa [#allocation4], 1
    %s992 = scalar_lea.sflag [#allocation4], 1
    %993 = vsyncpa %s992, 1

</llo_original>
